<compile_context>
chip_gen: v7x
topology: tpu7x:2x2x1
jax: 0.10.0
libtpu: 0.0.40
codegen_flags: <defaults>
</compile_context>

<pallas_src>
import functools

import jax
import jax.numpy as jnp
from jax.experimental import pallas as pl
from jax.experimental.pallas import tpu as pltpu


def _patch_embed_kernel(sed_ref, x_ref, w_ref, b_ref, o_ref, *, tn):
    """One grid step = (embed-dim tile dt, batch b, block of TM patches).

    sed_ref : SMEM (B,) int32   -- sample_embed_dim per batch element (scalar prefetch)
    x_ref   : VMEM (TM, P)      -- im2col'd patches, bf16
    w_ref   : VMEM (P, TN)      -- flattened conv weight slab, bf16
    b_ref   : VMEM (1, TN)      -- conv bias tile, f32
    o_ref   : VMEM (TM, TN)     -- output tile, f32
    """
    dt = pl.program_id(0)
    b = pl.program_id(1)
    d0 = dt * tn
    sed = sed_ref[b]
    tm = o_ref.shape[0]

    @pl.when(d0 >= sed)              # whole embed-dim tile masked -> store zeros, skip matmul
    def _dead():
        o_ref[...] = jnp.zeros(o_ref.shape, o_ref.dtype)

    @pl.when(d0 < sed)
    def _live():
        # Single large MXU matmul: K = C*ph*pw, M = TM, N = TN, f32 accumulation.
        acc = jnp.dot(x_ref[...], w_ref[...], preferred_element_type=jnp.float32)
        y = acc + b_ref[...]                                   # (1, TN) broadcasts over TM
        live = (jax.lax.broadcasted_iota(jnp.int32, (tm, tn), 1) + d0) < sed
        o_ref[...] = jnp.where(live, y, 0.0).astype(o_ref.dtype)


def _round_up(n, m):
    return ((n + m - 1) // m) * m


def _choose_tm(L, cap=512):
    """Largest divisor of L that is a multiple of 8 and <= cap; else full L (allowed by the
    (8,128) rule when the block equals the full array dim)."""
    for d in range(min(L, cap), 7, -1):
        if L % d == 0 and d % 8 == 0:
            return d
    return L


@functools.partial(jax.jit, static_argnames=("patch_size",))
def patch_embed_super(x, weight, bias, sample_embed_dim, *, patch_size):
    """Equivalent of PatchembedSuper.forward(x, sample_embed_dim) with scale=False,
    batch_inference=False.

    x:      (B, C, H, W) float32    (NCHW, like torch)
    weight: (D, C, ph, pw) float32  (torch Conv2d weight layout)
    bias:   (D,) float32
    sample_embed_dim: (B,) int32
    returns (B, num_patches, D) float32
    """
    B, C, H, W = x.shape
    ph = pw = patch_size
    D = weight.shape[0]
    assert H % ph == 0 and W % pw == 0, "image size must be divisible by patch size"
    gh, gw = H // ph, W // pw
    L = gh * gw
    P = C * ph * pw

    # --- wrapper-side im2col (one extra HBM pass over x; buys full-rate MXU in the kernel) ---
    # (B, C, gh, ph, gw, pw) -> (B, gh, gw, C, ph, pw) -> (B, L, P), cast to bf16.
    x6 = x.reshape(B, C, gh, ph, gw, pw)
    x_col = jnp.transpose(x6, (0, 2, 4, 1, 3, 5)).reshape(B, L, P).astype(jnp.bfloat16)

    # Conv weight -> (P, D) bf16 slab; bias -> (1, D) f32.  K-axis ordering (c, p, q) matches x_col.
    w2 = weight.reshape(D, P).T.astype(jnp.bfloat16)
    b2 = bias.reshape(1, D).astype(jnp.float32)

    # --- tile selection --------------------------------------------------------------------
    TM = _choose_tm(L)                       # patches per step; >=256 on real ViT row counts
    if D % 128 != 0:
        # Non-128-multiple widths must use the full-dim block (valid per the (8,128) rule).
        # TODO(synk): pad D to a multiple of 128 for large non-aligned widths.
        TN = D
    elif P * D * 2 <= (6 << 20):             # bf16 weight small enough to keep fully resident
        TN = D                               # (2x-buffered slab still well under VMEM budgets)
    elif D % 256 == 0:
        TN = 256                             # fills v6e/v7x 256-wide MXUs; fine on v5e too
    else:
        TN = 128
    n_dt = D // TN

    # --- VMEM budget from PADDED tile sizes x double-buffering (+ slack) ---------------------
    x_blk = _round_up(TM, 16) * _round_up(P, 128) * 2          # bf16
    w_blk = _round_up(P, 16) * _round_up(TN, 128) * 2          # bf16
    bias_blk = 8 * _round_up(TN, 128) * 4                      # f32
    o_blk = _round_up(TM, 8) * _round_up(TN, 128) * 4          # f32
    vmem_limit = int(min(2 * (x_blk + w_blk + bias_blk + o_blk) + (8 << 20), 48 << 20))

    # Grid: embed-dim tile axis OUTERMOST ("arbitrary") -> weight streams n_dt times total and
    # megacore (v7x) shards on B / row-blocks; x (bf16, the smaller operand) re-streams per dt.
    def x_map(dt, b, it, sed):
        return (b, it, 0)

    def w_map(dt, b, it, sed):
        return (0, dt)                        # constant within a dt group -> DMA elided

    def bias_map(dt, b, it, sed):
        return (0, dt)

    def o_map(dt, b, it, sed):
        return (b, it, dt)

    kernel = functools.partial(_patch_embed_kernel, tn=TN)

    out = pl.pallas_call(
        kernel,
        out_shape=jax.ShapeDtypeStruct((B, L, D), jnp.float32),
        grid_spec=pltpu.PrefetchScalarGridSpec(
            num_scalar_prefetch=1,
            grid=(n_dt, B, L // TM),
            in_specs=[
                pl.BlockSpec((pl.Squeezed(), TM, P), x_map),
                pl.BlockSpec((P, TN), w_map),
                pl.BlockSpec((1, TN), bias_map),
            ],
            out_specs=pl.BlockSpec((pl.Squeezed(), TM, TN), o_map),
        ),
        compiler_params=pltpu.CompilerParams(
            dimension_semantics=("arbitrary", "parallel", "parallel"),
            vmem_limit_bytes=vmem_limit,
        ),
    )(sample_embed_dim.astype(jnp.int32), x_col, w2, b2)

    return out


def _reference(x, weight, bias, sample_embed_dim, patch_size):
    """Pure-JAX f32 reference mirroring the torch forward (scale=False, batch_inference=False)."""
    y = jax.lax.conv_general_dilated(
        x, weight, window_strides=(patch_size, patch_size), padding="VALID",
        dimension_numbers=("NCHW", "OIHW", "NCHW"))
    y = y + bias[None, :, None, None]
    B, D, gh, gw = y.shape
    y = y.reshape(B, D, gh * gw).transpose(0, 2, 1)            # (B, L, D)
    mask = jnp.arange(D)[None, None, :] < sample_embed_dim[:, None, None]
    return y * mask


if __name__ == "__main__":
    # Small shapes consistent with the module: img=16, patch=4, C=4, embed_dim=32, B=2
    B, C, H, W = 2, 4, 16, 16
    patch_size = 4
    embed_dim = 32

    key = jax.random.PRNGKey(0)
    kx, kw, kb = jax.random.split(key, 3)
    x = jax.random.normal(kx, (B, C, H, W), dtype=jnp.float32)
    weight = jax.random.normal(kw, (embed_dim, C, patch_size, patch_size),
                               dtype=jnp.float32) * 0.02
    bias = jax.random.normal(kb, (embed_dim,), dtype=jnp.float32) * 0.02
    # per-batch sampled embedding dims (sub-network widths)
    sample_embed_dim = jnp.array([24, 16], dtype=jnp.int32)

    out = patch_embed_super(x, weight, bias, sample_embed_dim, patch_size=patch_size)
    out = jax.block_until_ready(out)

    ref = _reference(x, weight, bias, sample_embed_dim, patch_size)
    assert out.shape == (B, (H // patch_size) * (W // patch_size), embed_dim)
    # bf16 matmul operands with f32 accumulation vs. pure-f32 reference -> modest tolerance.
    assert jnp.allclose(out, ref, atol=2e-2, rtol=2e-2), "mismatch vs reference"

    print("KERNEL_OK")
</pallas_src>

<mosaic_0001>
module attributes {stable_mosaic.version = 11 : i64} {
  func.func @_patch_embed_kernel(%arg0: i32, %arg1: i32, %arg2: i32, %arg3: memref<2xi32, #tpu.memory_space<smem>>, %arg4: memref<1x16x64xbf16, #tpu.memory_space<vmem>>, %arg5: memref<64x32xbf16, #tpu.memory_space<vmem>>, %arg6: memref<1x32xf32, #tpu.memory_space<vmem>>, %arg7: memref<1x16x32xf32, #tpu.memory_space<vmem>>) attributes {dimension_semantics = [#tpu.dimension_semantics<arbitrary>, #tpu.dimension_semantics<parallel>, #tpu.dimension_semantics<parallel>], iteration_bounds = array<i64: 1, 2, 1>, scalar_prefetch = 1 : i64, scratch_operands = 0 : i64, tpu.core_type = #tpu.core_type<tc>, window_params = [{transform_indices = @transform_0, window_bounds = array<i64: 1, 16, 64>}, {transform_indices = @transform_1, window_bounds = array<i64: 64, 32>}, {transform_indices = @transform_2, window_bounds = array<i64: 1, 32>}, {transform_indices = @transform_3, window_bounds = array<i64: 1, 16, 32>}]} {
    %c32_i32 = arith.constant 32 : i32
    %0 = arith.muli %arg0, %c32_i32 : i32
    %1 = arith.index_cast %arg1 : i32 to index
    %2 = memref.load %arg3[%1] : memref<2xi32, #tpu.memory_space<smem>>
    %3 = arith.cmpi sge, %0, %2 : i32
    %4 = arith.extui %3 : i1 to i32
    %c0_i32 = arith.constant 0 : i32
    %5 = arith.cmpi ne, %4, %c0_i32 : i32
    scf.if %5 {
      %cst = arith.constant 0.000000e+00 : f32
      %9 = vector.broadcast %cst : f32 to vector<16x32xf32>
      %c0 = arith.constant 0 : index
      %c0_1 = arith.constant 0 : index
      %c0_2 = arith.constant 0 : index
      %10 = vector.load %arg7[%c0, %c0_1, %c0_2] : memref<1x16x32xf32, #tpu.memory_space<vmem>>, vector<1x16x32xf32>
      %11 = vector.shape_cast %10 : vector<1x16x32xf32> to vector<16x32xf32>
      %12 = vector.shape_cast %9 : vector<16x32xf32> to vector<1x16x32xf32>
      tpu.vector_store %arg7[%c0, %c0_1, %c0_2], %12 {strides = array<i32>} : memref<1x16x32xf32, #tpu.memory_space<vmem>>, vector<1x16x32xf32>,
    } else {
    }
    %6 = arith.cmpi slt, %0, %2 : i32
    %7 = arith.extui %6 : i1 to i32
    %c0_i32_0 = arith.constant 0 : i32
    %8 = arith.cmpi ne, %7, %c0_i32_0 : i32
    scf.if %8 {
      %c0 = arith.constant 0 : index
      %c0_1 = arith.constant 0 : index
      %c0_2 = arith.constant 0 : index
      %9 = vector.load %arg4[%c0, %c0_1, %c0_2] : memref<1x16x64xbf16, #tpu.memory_space<vmem>>, vector<1x16x64xbf16>
      %10 = vector.shape_cast %9 : vector<1x16x64xbf16> to vector<16x64xbf16>
      %c0_3 = arith.constant 0 : index
      %c0_4 = arith.constant 0 : index
      %11 = vector.load %arg5[%c0_3, %c0_4] : memref<64x32xbf16, #tpu.memory_space<vmem>>, vector<64x32xbf16>
      %cst = arith.constant dense<0.000000e+00> : vector<16x32xf32>
      %12 = tpu.matmul %10, %11, %cst {dimension_numbers = #tpu.dot_dimension_numbers<[1], [0], [0], [1], [0, 0, 1, 1], [], []>} : vector<16x64xbf16>, vector<64x32xbf16>, vector<16x32xf32> -> vector<16x32xf32>
      %c0_5 = arith.constant 0 : index
      %c0_6 = arith.constant 0 : index
      %13 = vector.load %arg6[%c0_5, %c0_6] : memref<1x32xf32, #tpu.memory_space<vmem>>, vector<1x32xf32>
      %14 = vector.broadcast %13 : vector<1x32xf32> to vector<16x32xf32>
      %15 = arith.addf %12, %14 : vector<16x32xf32>
      %16 = tpu.iota {dimensions = array<i32: 1>} : vector<16x32xi32>
      %17 = vector.broadcast %0 : i32 to vector<16x32xi32>
      %18 = arith.addi %16, %17 : vector<16x32xi32>
      %19 = vector.broadcast %2 : i32 to vector<16x32xi32>
      %20 = arith.cmpi slt, %18, %19 : vector<16x32xi32>
      %cst_7 = arith.constant 0.000000e+00 : f32
      %21 = vector.broadcast %cst_7 : f32 to vector<16x32xf32>
      %22 = arith.select %20, %15, %21 : vector<16x32xi1>, vector<16x32xf32>
      %c0_8 = arith.constant 0 : index
      %c0_9 = arith.constant 0 : index
      %c0_10 = arith.constant 0 : index
      %23 = vector.load %arg7[%c0_8, %c0_9, %c0_10] : memref<1x16x32xf32, #tpu.memory_space<vmem>>, vector<1x16x32xf32>
      %24 = vector.shape_cast %23 : vector<1x16x32xf32> to vector<16x32xf32>
      %25 = vector.shape_cast %22 : vector<16x32xf32> to vector<1x16x32xf32>
      tpu.vector_store %arg7[%c0_8, %c0_9, %c0_10], %25 {strides = array<i32>} : memref<1x16x32xf32, #tpu.memory_space<vmem>>, vector<1x16x32xf32>,
    } else {
    }
    return
  }
  func.func @transform_0(%arg0: i32, %arg1: i32, %arg2: i32, %arg3: memref<2xi32, #tpu.memory_space<smem>>) -> (i32, i32, i32) {
    %c0_i32 = arith.constant 0 : i32
    %c0_i32_0 = arith.constant 0 : i32
    return %arg1, %arg2, %c0_i32 : i32, i32, i32
  }
  func.func @transform_1(%arg0: i32, %arg1: i32, %arg2: i32, %arg3: memref<2xi32, #tpu.memory_space<smem>>) -> (i32, i32) {
    %c0_i32 = arith.constant 0 : i32
    %c0_i32_0 = arith.constant 0 : i32
    return %c0_i32, %arg0 : i32, i32
  }
  func.func @transform_2(%arg0: i32, %arg1: i32, %arg2: i32, %arg3: memref<2xi32, #tpu.memory_space<smem>>) -> (i32, i32) {
    %c0_i32 = arith.constant 0 : i32
    %c0_i32_0 = arith.constant 0 : i32
    return %c0_i32, %arg0 : i32, i32
  }
  func.func @transform_3(%arg0: i32, %arg1: i32, %arg2: i32, %arg3: memref<2xi32, #tpu.memory_space<smem>>) -> (i32, i32, i32) {
    %c0_i32 = arith.constant 0 : i32
    return %arg1, %arg2, %arg0 : i32, i32, i32
  }
}

</mosaic_0001>

<llo_original>
// kernel: patch_embed_super.1
$region0: #{patch_embed_super.1}
  #allocation0 [shape = 'u32[]', space=smem, size = 0x4, offset = 0x4, fixed_abs, tag = 'smem constant byte address 0x4 - core index']
  #allocation1 [shape = 'u32[144,128]{1,0:T(1,128)}', space=vmem, size = 0x12000, scoped, tag = 'internal scratch']
  #allocation2 [shape = 's32[1]{0}', space=sflag, size = 0x4, scoped, tag = 'scoped memory for patch_embed_super.1']
  #allocation3 [shape = 'u8[512]{0}', space=smem, size = 0x200, scoped, tag = 'prefetched SMEM operand 0']
  %s0 = inlined_call_operand.vmem [shape: s32[2], index: 0, kind: input, shape index: {}]
  %s1 = inlined_call_operand.vmem [shape: bf16[2,16,64], index: 1, kind: input, shape index: {}]
  %s2 = inlined_call_operand.vmem [shape: bf16[64,32], index: 2, kind: input, shape index: {}]
  %s3 = inlined_call_operand.vmem [shape: f32[1,32], index: 3, kind: input, shape index: {}]
  %s4 = inlined_call_operand.hbm [shape: f32[2,16,32], index: 4, kind: output, shape index: {}]
  %s5 = sld [smem:[#allocation0]]
  $region53: #{patch_embed_super.1} parent=0
    _
  %s7 = ssub.s32 1, %s5
  %s8 = scalar_select 0, %s7, %s5
  %s9 = sshll.u32 %s0, 4
  %s10 = int_to_ptr.vmem [resolvable:$true] %s9
  %12 = dma.vmem_to_smem %s10, 16, [#allocation3], [#allocation2]
  %13 = dma.done [#allocation2], 16
  %14 = sfence
  $region1: #{patch_embed_super.1} parent=0
    #allocation4 [shape = 'u8[16384]{0}', space=vmem, size = 0x4000, scoped, tag = 'output window, operand 0']
    #allocation5 [shape = 's32[2]{0}', space=sflag, size = 0x8, scoped, tag = 'scoped memory for patch_embed_super.1']
    %15 = vsyncpa [#allocation5], 0
    %s16 = scalar_lea.sflag [#allocation5], 1
    %17 = vsyncpa %s16, 0
    loop: start=0, step=1, limit=4
    $region2: #{patch_embed_super.1} parent=1 // loop_pre_header
      _
    $region3: #{patch_embed_super.1} parent=1 // loop_header
      %s19 = sphi 0, %s23
      %p20 = scmp.ge.s32.totalorder %s19, 4
      %s26 = sphi 0, %s45
      %s27 = sphi 0, %s41
      %s28 = sphi 0, %s37
      %s29 = sphi 0, %s26
      %s30 = sphi 0, %s27
      %s31 = sphi 0, %s28
      %s32 = sphi 0, %s29
      %s33 = sphi 0, %s30
      %s34 = sphi 0, %s31
      %s50 = sphi 0, %s52
      %s53 = sphi 0, %s50
      %s54 = sphi 0, %s53
      %s70 = sphi 0, %s54
      %s76 = sphi 0, %s78
      %s79 = sphi 0, %s76
      %s80 = sphi 0, %s79
      %s96 = sphi 0, %s80
      %s102 = sphi 0, %s104
      %s105 = sphi 0, %s102
      %s106 = sphi 0, %s105
      %s122 = sphi 0, %s106
      %s132 = sphi 0, %s134
      %s135 = sphi 0, %s132
      %s136 = sphi 0, %s135
      %s152 = sphi 0, %s136
    $region4: #{patch_embed_super.1} parent=1 // loop_header_branch
      %22 = sbr.rel (%p20) target = $region8
    $region5: #{patch_embed_super.1} parent=1 // loop_body
      %s24 = ssub.s32 %s19, 1
      %s25 = ssub.s32 %s19, 2
      %s35 = sadd.s32 1, %s28
      %p36 = scmp.ge.s32.totalorder %s35, 1
      %s37 = scalar_select %p36, 0, %s35
      %s38 = sadd.s32 1, %s27
      %s39 = scalar_select %p36, %s38, %s27
      %p40 = scmp.ge.s32.totalorder %s39, 2
      %s41 = scalar_select %p40, 0, %s39
      %s42 = sadd.s32 1, %s26
      %s43 = scalar_select %p40, %s42, %s26
      %p44 = scmp.ge.s32.totalorder %s43, 1
      %s45 = scalar_select %p44, 0, %s43
      %s46 = ssub.s32 %s27, %s41
      %s47 = ssub.s32 %s28, %s37
      %s48 = sor.u32 %s46, %s47
      %p49 = scmp.eq.s32.totalorder %s48, 0
      %s51 = sadd.s32 %s50, 1
      %s52 = scalar_select %p49, %s50, %s51
      %p55 = pneg %p49
      %p56 = scmp.eq.s32.totalorder %s19, 1
      %p57 = por %p55, %p56
      %p58 = scmp.ne.s32.totalorder %s50, %s53
      %p59 = scmp.eq.s32.totalorder %s19, 0
      %p60 = por %p58, %p59
      %p61 = scmp.ne.s32.totalorder %s50, %s53
      %p62 = scmp.eq.s32.totalorder %s24, 1
      %p63 = por %p61, %p62
      %p64 = scmp.ne.s32.totalorder %s53, %s54
      %p65 = scmp.eq.s32.totalorder %s24, 0
      %p66 = por %p64, %p65
      %p67 = scmp.ne.s32.totalorder %s53, %s54
      %p68 = scmp.eq.s32.totalorder %s25, 1
      %p69 = por %p67, %p68
      %p71 = scmp.ne.s32.totalorder %s54, %s70
      %p72 = scmp.eq.s32.totalorder %s25, 0
      %p73 = por %p71, %p72
      %s74 = ssub.s32 %s26, %s45
      %p75 = scmp.eq.s32.totalorder %s74, 0
      %s77 = sadd.s32 %s76, 1
      %s78 = scalar_select %p75, %s76, %s77
      %p81 = pneg %p75
      %p82 = scmp.eq.s32.totalorder %s19, 1
      %p83 = por %p81, %p82
      %p84 = scmp.ne.s32.totalorder %s76, %s79
      %p85 = scmp.eq.s32.totalorder %s19, 0
      %p86 = por %p84, %p85
      %p87 = scmp.ne.s32.totalorder %s76, %s79
      %p88 = scmp.eq.s32.totalorder %s24, 1
      %p89 = por %p87, %p88
      %p90 = scmp.ne.s32.totalorder %s79, %s80
      %p91 = scmp.eq.s32.totalorder %s24, 0
      %p92 = por %p90, %p91
      %p93 = scmp.ne.s32.totalorder %s79, %s80
      %p94 = scmp.eq.s32.totalorder %s25, 1
      %p95 = por %p93, %p94
      %p97 = scmp.ne.s32.totalorder %s80, %s96
      %p98 = scmp.eq.s32.totalorder %s25, 0
      %p99 = por %p97, %p98
      %s100 = ssub.s32 %s26, %s45
      %p101 = scmp.eq.s32.totalorder %s100, 0
      %s103 = sadd.s32 %s102, 1
      %s104 = scalar_select %p101, %s102, %s103
      %p107 = pneg %p101
      %p108 = scmp.eq.s32.totalorder %s19, 1
      %p109 = por %p107, %p108
      %p110 = scmp.ne.s32.totalorder %s102, %s105
      %p111 = scmp.eq.s32.totalorder %s19, 0
      %p112 = por %p110, %p111
      %p113 = scmp.ne.s32.totalorder %s102, %s105
      %p114 = scmp.eq.s32.totalorder %s24, 1
      %p115 = por %p113, %p114
      %p116 = scmp.ne.s32.totalorder %s105, %s106
      %p117 = scmp.eq.s32.totalorder %s24, 0
      %p118 = por %p116, %p117
      %p119 = scmp.ne.s32.totalorder %s105, %s106
      %p120 = scmp.eq.s32.totalorder %s25, 1
      %p121 = por %p119, %p120
      %p123 = scmp.ne.s32.totalorder %s106, %s122
      %p124 = scmp.eq.s32.totalorder %s25, 0
      %p125 = por %p123, %p124
      %s126 = ssub.s32 %s27, %s41
      %s127 = ssub.s32 %s28, %s37
      %s128 = sor.u32 %s126, %s127
      %s129 = ssub.s32 %s26, %s45
      %s130 = sor.u32 %s128, %s129
      %p131 = scmp.eq.s32.totalorder %s130, 0
      %s133 = sadd.s32 %s132, 1
      %s134 = scalar_select %p131, %s132, %s133
      %p137 = pneg %p131
      %p138 = scmp.eq.s32.totalorder %s19, 1
      %p139 = por %p137, %p138
      %p140 = scmp.ne.s32.totalorder %s132, %s135
      %p141 = scmp.eq.s32.totalorder %s19, 0
      %p142 = por %p140, %p141
      %p143 = scmp.ne.s32.totalorder %s132, %s135
      %p144 = scmp.eq.s32.totalorder %s24, 1
      %p145 = por %p143, %p144
      %p146 = scmp.ne.s32.totalorder %s135, %s136
      %p147 = scmp.eq.s32.totalorder %s24, 0
      %p148 = por %p146, %p147
      %p149 = scmp.ne.s32.totalorder %s135, %s136
      %p150 = scmp.eq.s32.totalorder %s25, 1
      %p151 = por %p149, %p150
      %p153 = scmp.ne.s32.totalorder %s136, %s152
      %p154 = scmp.eq.s32.totalorder %s25, 0
      %p155 = por %p153, %p154
      %p156 = scmp.le.s32.totalorder 1, %s19
      %p157 = scmp.lt.s32.totalorder %s19, 3
      %p158 = pnand %p156, %p157
      %p159 = pneg %p158
      // Predicated region
      $region9: #{patch_embed_super.1} parent=5 // pred_check
        _
      $region10: #{patch_embed_super.1} parent=5 // pred_check_branch
        %161 = sbr.rel (%p158) target = $region12
      $region11: #{patch_embed_super.1} parent=5 // pred_region
        %s162 = ssub.s32 %s19, 1
        // Predicated region
        $region13: #{patch_embed_super.1} parent=11 // pred_check
          %p163 = pneg %p92
        $region14: #{patch_embed_super.1} parent=11 // pred_check_branch
          %165 = sbr.rel (%p163) target = $region16
        $region15: #{patch_embed_super.1} parent=11 // pred_region
          %p166 = scmp.lt.s32.totalorder %s29, 0
          %s167 = scalar_select %p166, %s29, 0
          %s168 = smul.addr %s167, 4
          %s169 = scalar_lea.vmem %s2, %s168
        $region16: #{patch_embed_super.1} parent=11 // pred_fallthru
          _
        // Predicated region
        $region17: #{patch_embed_super.1} parent=11 // pred_check
          %p170 = pneg %p118
        $region18: #{patch_embed_super.1} parent=11 // pred_check_branch
          %172 = sbr.rel (%p170) target = $region20
        $region19: #{patch_embed_super.1} parent=11 // pred_region
          %p173 = scmp.lt.s32.totalorder %s29, 0
          %s174 = scalar_select %p173, %s29, 0
          %s175 = scalar_lea.vmem %s3, %s174
        $region20: #{patch_embed_super.1} parent=11 // pred_fallthru
          _
      $region12: #{patch_embed_super.1} parent=5 // pred_fallthru
        _
      %p176 = scmp.lt.s32.totalorder %s19, 2
      // Predicated region
      $region21: #{patch_embed_super.1} parent=5 // pred_check
        %p177 = pneg %p176
      $region22: #{patch_embed_super.1} parent=5 // pred_check_branch
        %179 = sbr.rel (%p177) target = $region24
      $region23: #{patch_embed_super.1} parent=5 // pred_region
        // Predicated region
        $region25: #{patch_embed_super.1} parent=23 // pred_check
          %p180 = pneg %p60
        $region26: #{patch_embed_super.1} parent=23 // pred_check_branch
          %182 = sbr.rel (%p180) target = $region28
        $region27: #{patch_embed_super.1} parent=23 // pred_region
          %s183 = smul.u32 2, %s28
          %p184 = scmp.lt.s32.totalorder %s27, 1
          %s185 = scalar_select %p184, %s27, 1
          %p186 = scmp.lt.s32.totalorder %s183, 1
          %s187 = scalar_select %p186, %s183, 1
          %s188 = smul.addr %s185, 2
          %s189 = sadd.s32 %s187, %s188
          %s190 = smul.addr %s189, 4
          %s191 = scalar_lea.vmem %s1, %s190
          %s192 = smul.u32 2, %s28
        $region28: #{patch_embed_super.1} parent=23 // pred_fallthru
          _
      $region24: #{patch_embed_super.1} parent=5 // pred_fallthru
        _
      %p193 = scmp.le.s32.totalorder 1, %s19
      %p194 = scmp.lt.s32.totalorder %s19, 3
      %p195 = pnand %p193, %p194
      %p196 = pneg %p195
      // Predicated region
      $region29: #{patch_embed_super.1} parent=5 // pred_check
        _
      $region30: #{patch_embed_super.1} parent=5 // pred_check_branch
        %198 = sbr.rel (%p195) target = $region32
      $region31: #{patch_embed_super.1} parent=5 // pred_region
        %s199 = ssub.s32 %s19, 1
        %s200 = smul.u32 2, %s31
        %p201 = scmp.lt.s32.totalorder %s30, 1
        %s202 = scalar_select %p201, %s30, 1
        %p203 = scmp.lt.s32.totalorder %s200, 1
        %s204 = scalar_select %p203, %s200, 1
        %s205 = smul.addr %s202, 2
        %s206 = sadd.s32 %s204, %s205
        %s207 = smul.addr %s206, 4
        %s208 = scalar_lea.vmem %s1, %s207
        %p209 = pneg %p66
        %p210 = pneg %p63
        %p211 = scmp.lt.s32.totalorder %s29, 0
        %s212 = scalar_select %p211, %s29, 0
        %s213 = smul.addr %s212, 4
        %s214 = scalar_lea.vmem %s2, %s213
        %p215 = pneg %p92
        %p216 = pneg %p89
        %p217 = scmp.lt.s32.totalorder %s29, 0
        %s218 = scalar_select %p217, %s29, 0
        %s219 = scalar_lea.vmem %s3, %s218
        %p220 = pneg %p118
        %p221 = pneg %p115
        %p222 = pneg %p148
        %p223 = pneg %p145
        %s224 = sand.u32 %s135, 1
        %s225 = scalar_lea.sflag [#allocation5], %s224
        %s226 = sand.u32 %s135, 1
        %s227 = smul.addr %s226, 16
        %s228 = scalar_lea.vmem [#allocation4], %s227
        %s229 = smul.u32 2, %s31
        %p230 = scmp.lt.s32.totalorder %s30, 1
        %s231 = scalar_select %p230, %s30, 1
        %p232 = scmp.lt.s32.totalorder %s229, 1
        %s233 = scalar_select %p232, %s229, 1
        %s234 = smul.addr %s231, 2
        %s235 = sadd.s32 %s233, %s234
        %s236 = smul.addr %s235, 4
        %s237 = scalar_lea.vmem %s1, %s236
        %s238 = smul.u32 2, %s31
        %p239 = scmp.lt.s32.totalorder %s29, 0
        %s240 = scalar_select %p239, %s29, 0
        %s241 = smul.addr %s240, 4
        %s242 = scalar_lea.vmem %s2, %s241
        %p243 = scmp.lt.s32.totalorder %s29, 0
        %s244 = scalar_select %p243, %s29, 0
        %s245 = scalar_lea.vmem %s3, %s244
        %s246 = smul.u32 2, %s31
        %s248 = smul.u32 %s29, 32
        %s249 = sld [smem:[#allocation3 + %s30]]
        %p250 = scmp.ge.s32.totalorder %s248, %s249
        // Predicated region
        $region33: #{patch_embed_super.1} parent=31 // pred_check
          %p251 = pneg %p250
        $region34: #{patch_embed_super.1} parent=31 // pred_check_branch
          %253 = sbr.rel (%p251) target = $region36
        $region35: #{patch_embed_super.1} parent=31 // pred_region
          %vm254 = vcmask 261120
          %255 = vst.msk [vmem:[%s228] sm:$0xff] %vm254, 0.0
          %256 = vst.msk [vmem:[%s228 + $0x8] sm:$0xff] %vm254, 0.0
        $region36: #{patch_embed_super.1} parent=31 // pred_fallthru
          _
        %p257 = scmp.lt.s32.totalorder %s248, %s249
        // Predicated region
        $region37: #{patch_embed_super.1} parent=31 // pred_check
          %p258 = pneg %p257
        $region38: #{patch_embed_super.1} parent=31 // pred_check_branch
          %260 = sbr.rel (%p258) target = $region40
        $region39: #{patch_embed_super.1} parent=31 // pred_region
          %v261 = vld [vmem:[%s237] sm:$0xf]
          %v262 = vld [vmem:[%s237 + $0x4] sm:$0xf]
          %v263 = vld [vmem:[%s242] sm:$0xf]
          %v264 = vld [vmem:[%s242 + $0x4] sm:$0xf]
          %v265 = vld [vmem:[%s242 + $0x8] sm:$0xf]
          %v266 = vld [vmem:[%s242 + $0xc] sm:$0xf]
          %v267 = vld [vmem:[%s242 + $0x10] sm:$0xf]
          %v268 = vld [vmem:[%s242 + $0x14] sm:$0xf]
          %v269 = vld [vmem:[%s242 + $0x18] sm:$0xf]
          %v270 = vld [vmem:[%s242 + $0x1c] sm:$0xf]
          %v271 = vld [vmem:[%s245] sm:$0x1]
          %v273 = vlaneseq
          %v274 = vshrl.u32 %v273, 7
          %v275 = vsub.s32 0, %v274
          %v276 = vrot.slane %v271, %v275
          %v280 = vunpack.c.l.b16 %v261
          %v281 = vunpack.c.l.b16 %v262
          %v282 = vpack.c.b16 %v281, %v280
          %v291 = vunpack.c.l.b16 %v263
          %v292 = vunpack.c.l.b16 %v264
          %v293 = vunpack.c.l.b16 %v265
          %v294 = vunpack.c.l.b16 %v266
          %v295 = vunpack.c.l.b16 %v267
          %v296 = vunpack.c.l.b16 %v268
          %v297 = vunpack.c.l.b16 %v269
          %v298 = vunpack.c.l.b16 %v270
          %v299 = vpack.c.b16 %v292, %v291
          %v300 = vpack.c.b16 %v294, %v293
          %v301 = vpack.c.b16 %v296, %v295
          %v302 = vpack.c.b16 %v298, %v297
          %vm307 = vcmask 523264
          %v309 = vsel %vm307, %v282, 0
          %311 = vmatprep.subr.bf16.mxu0 0
          %312 = vmatpush1.bf16.msra.mxu0 %v299
          %313 = vmatprep.subr.bf16.mxu0 0
          %314 = vmatpush1.bf16.msra.mxu0 %v300
          %315 = vmatprep.subr.bf16.mxu0 0
          %316 = vmatpush1.bf16.msra.mxu0 %v301
          %317 = vmatprep.subr.bf16.mxu0 0
          %318 = vmatpush1.bf16.msra.mxu0 %v302
          %319 = vmatprep.subr.bf16.mxu0 0
          %320 = vmatpush1.bf16.msra.mxu0 0
          %321 = vmatprep.subr.bf16.mxu0 0
          %322 = vmatpush1.bf16.msra.mxu0 0
          %323 = vmatprep.subr.bf16.mxu0 0
          %324 = vmatpush1.bf16.msra.mxu0 0
          %325 = vmatprep.subr.bf16.mxu0 0
          %326 = vmatpush1.bf16.msra.mxu0 0
          %327 = vmatprep.subr.bf16.mxu0 0
          %328 = vmatpush1.bf16.msra.mxu0 0
          %329 = vmatprep.subr.bf16.mxu0 0
          %330 = vmatpush1.bf16.msra.mxu0 0
          %331 = vmatprep.subr.bf16.mxu0 0
          %332 = vmatpush1.bf16.msra.mxu0 0
          %333 = vmatprep.subr.bf16.mxu0 0
          %334 = vmatpush1.bf16.msra.mxu0 0
          %335 = vmatprep.subr.bf16.mxu0 0
          %336 = vmatpush1.bf16.msra.mxu0 0
          %337 = vmatprep.subr.bf16.mxu0 0
          %338 = vmatpush1.bf16.msra.mxu0 0
          %339 = vmatprep.subr.bf16.mxu0 0
          %340 = vmatpush1.bf16.msra.mxu0 0
          %341 = vmatprep.subr.bf16.mxu0 0
          %342 = vmatpush1.bf16.msra.mxu0 0
          %343 = vmatprep.mubr.bf16.mxu0 0
          %344 = vmatmul.mubr.bf16.gmra.mrb[0].mxu0 %v309
          %v345 = vpop.f32.mrb[0].mxu0
          %v346 = vadd.f32 %v276, %v345
          %v347 = vpop.f32.mrb[0].mxu0
          %v348 = vpop.f32.mrb[0].mxu0
          %v349 = vadd.f32 %v276, %v348
          %v350 = vpop.f32.mrb[0].mxu0
          %351 = vdwg.mxu0
          %v352 = vlaneseq
          %v353 = vand.u32 %v352, 127
          %v354 = vstv %s248
          %v355 = vadd.s32 %v353, %v354
          %v356 = vstv %s249
          %vm357 = vcmp.lt.s32.totalorder %v355, %v356
          %v358 = vsel %vm357, %v346, 0.0
          %v359 = vsel %vm357, %v349, 0.0
          %vm360 = vcmask 261120
          %361 = vst.msk [vmem:[%s228] sm:$0xff] %vm360, %v358
          %362 = vst.msk [vmem:[%s228 + $0x8] sm:$0xff] %vm360, %v359
        $region40: #{patch_embed_super.1} parent=31 // pred_fallthru
          _
        %s363 = sand.u32 %s135, 1
        %s364 = scalar_lea.sflag [#allocation5], %s363
        %s365 = sand.u32 %s135, 1
        %s366 = smul.addr %s365, 16
        %s367 = scalar_lea.vmem [#allocation4], %s366
        // Predicated region
        $region41: #{patch_embed_super.1} parent=31 // pred_check
          %p368 = pneg %p145
        $region42: #{patch_embed_super.1} parent=31 // pred_check_branch
          %370 = sbr.rel (%p368) target = $region44
        $region43: #{patch_embed_super.1} parent=31 // pred_region
          %s371 = smul.u32 2, %s31
          %s373 = ssub.s32 256, 256
          %374 = vsyncadd %s364, %s373
          %s375 = sadd.s32 %s29, %s371
          %s376 = smul.addr %s30, 2
          %s377 = sadd.s32 %s375, %s376
          %s378 = smul.addr %s377, 128
          %s379 = scalar_lea.hbm %s4, %s378
          %s380 = sshll.u32 %s367, 4
          %s381 = int_to_ptr.vmem [resolvable:$true] %s380
          %386 = dma.vmem_to_hbm [thread:$0]  %s381, 256, %s379, %s364, 128, 128, 8
        $region44: #{patch_embed_super.1} parent=31 // pred_fallthru
          _
      $region32: #{patch_embed_super.1} parent=5 // pred_fallthru
        _
      %p387 = scmp.le.s32.totalorder 2, %s19
      // Predicated region
      $region45: #{patch_embed_super.1} parent=5 // pred_check
        %p388 = pneg %p387
      $region46: #{patch_embed_super.1} parent=5 // pred_check_branch
        %390 = sbr.rel (%p388) target = $region48
      $region47: #{patch_embed_super.1} parent=5 // pred_region
        %s391 = ssub.s32 %s19, 2
        // Predicated region
        $region49: #{patch_embed_super.1} parent=47 // pred_check
          %p392 = pneg %p151
        $region50: #{patch_embed_super.1} parent=47 // pred_check_branch
          %394 = sbr.rel (%p392) target = $region52
        $region51: #{patch_embed_super.1} parent=47 // pred_region
          %s395 = sand.u32 %s136, 1
          %s396 = scalar_lea.sflag [#allocation5], %s395
          %s397 = sand.u32 %s136, 1
          %s398 = smul.addr %s397, 16
          %s399 = scalar_lea.vmem [#allocation4], %s398
          %400 = dma.done %s396, 256
        $region52: #{patch_embed_super.1} parent=47 // pred_fallthru
          _
      $region48: #{patch_embed_super.1} parent=5 // pred_fallthru
        _
    $region6: #{patch_embed_super.1} parent=1 // loop_footer
      %s23 = sadd.s32 1, %s19
    $region7: #{patch_embed_super.1} parent=1 // loop_footer_branch
      %18 = sbr.rel target = $region3
    $region8: #{patch_embed_super.1} parent=1 // loop_exit
      _
    %401 = vsyncpa [#allocation5], 1
    %s402 = scalar_lea.sflag [#allocation5], 1
    %403 = vsyncpa %s402, 1

</llo_original>
